<compile_context>
chip_gen: v5e
topology: v5e:2x2
jax: 0.10.0
libtpu: 0.0.40
codegen_flags: <defaults>
</compile_context>

<pallas_src>
import functools

import jax
import jax.numpy as jnp
import numpy as np
from jax.experimental import pallas as pl
from jax.experimental.pallas import tpu as pltpu

EPS = 1e-5
LANE = 128
_VMEM_LIMIT = 48 * 1024 * 1024          # explicit scoped-VMEM limit (OK on v5e/v6e/v7x)
_VMEM_BUDGET = 20 * 1024 * 1024         # target working set for tile sizing


def _round_up(x, m):
    return (x + m - 1) // m * m


# ----------------------------- Pallas kernels ------------------------------ #

def conv_stats_kernel(p_ref, w_ref, y_ref, st_ref):
    """All 9 conv taps as ONE MXU matmul (K = 9*Cin, bf16 in / f32 acc) plus
    per-tile BatchNorm sum / sum-of-squares."""
    y = jnp.dot(p_ref[...], w_ref[...], preferred_element_type=jnp.float32)
    y_ref[...] = y
    s = jnp.sum(y, axis=0, keepdims=True)
    ss = jnp.sum(y * y, axis=0, keepdims=True)
    st_ref[...] = jnp.concatenate([s, ss], axis=0)[None]


def conv2_proj_stats_kernel(p_ref, w2_ref, xs_ref, ws_ref,
                            y2_ref, ysc_ref, st2_ref, stsc_ref):
    """conv2 (K = 9*Cout) and the 1x1 projection shortcut (K = Cin) fused in one
    kernel (the small shortcut matmul rides along as MXU filler), each with its
    own per-tile BN statistics."""
    y2 = jnp.dot(p_ref[...], w2_ref[...], preferred_element_type=jnp.float32)
    ysc = jnp.dot(xs_ref[...], ws_ref[...], preferred_element_type=jnp.float32)
    y2_ref[...] = y2
    ysc_ref[...] = ysc
    st2_ref[...] = jnp.concatenate(
        [jnp.sum(y2, axis=0, keepdims=True),
         jnp.sum(y2 * y2, axis=0, keepdims=True)], axis=0)[None]
    stsc_ref[...] = jnp.concatenate(
        [jnp.sum(ysc, axis=0, keepdims=True),
         jnp.sum(ysc * ysc, axis=0, keepdims=True)], axis=0)[None]


def _scale_shift(st, g, b, inv_m):
    """Exact full-batch BN affine from reduced sum / sumsq (st: (2, Cp))."""
    s = st[0:1, :]
    ss = st[1:2, :]
    mean = s * inv_m
    var = ss * inv_m - mean * mean
    scale = g * jax.lax.rsqrt(var + EPS)
    shift = b - mean * scale
    return scale, shift


def bn_relu_kernel(y_ref, st_ref, g_ref, b_ref, o_ref, *, inv_m):
    scale, shift = _scale_shift(st_ref[...], g_ref[...], b_ref[...], inv_m)
    o_ref[...] = jnp.maximum(y_ref[...] * scale + shift, 0.0).astype(o_ref.dtype)


def proj_residual_bn_relu_kernel(y2_ref, ysc_ref, st2_ref, stsc_ref,
                                 g2_ref, b2_ref, gs_ref, bs_ref, o_ref, *, inv_m):
    sc2, sh2 = _scale_shift(st2_ref[...], g2_ref[...], b2_ref[...], inv_m)
    scs, shs = _scale_shift(stsc_ref[...], gs_ref[...], bs_ref[...], inv_m)
    out = (y2_ref[...] * sc2 + sh2) + (ysc_ref[...] * scs + shs)
    o_ref[...] = jnp.maximum(out, 0.0).astype(o_ref.dtype)


def ident_residual_bn_relu_kernel(y2_ref, xs_ref, st2_ref, g2_ref, b2_ref, o_ref,
                                  *, inv_m):
    sc2, sh2 = _scale_shift(st2_ref[...], g2_ref[...], b2_ref[...], inv_m)
    out = (y2_ref[...] * sc2 + sh2) + xs_ref[...]
    o_ref[...] = jnp.maximum(out, 0.0).astype(o_ref.dtype)


# ------------------------------- JAX glue ---------------------------------- #

def _extract_patches(x_nhwc, ksize, stride, pad):
    """im2col -> (N*Hout*Wout, K*K*C), tap-major / channel-minor columns."""
    n, h, w, c = x_nhwc.shape
    xp = jnp.pad(x_nhwc, ((0, 0), (pad, pad), (pad, pad), (0, 0)))
    hout = (h + 2 * pad - ksize) // stride + 1
    wout = (w + 2 * pad - ksize) // stride + 1
    cols = []
    for dy in range(ksize):
        for dx in range(ksize):
            sl = xp[:, dy:dy + stride * (hout - 1) + 1:stride,
                    dx:dx + stride * (wout - 1) + 1:stride, :]
            cols.append(sl.reshape(n * hout * wout, c))
    return jnp.concatenate(cols, axis=1), hout, wout


def _conv_weight_2d(w_oihw):
    """PyTorch (O, I, kh, kw) -> (kh*kw*I, O), matching _extract_patches order."""
    o, i, kh, kw = w_oihw.shape
    return jnp.transpose(w_oihw, (2, 3, 1, 0)).reshape(kh * kw * i, o)


def _pad2(a, rows, cols):
    return jnp.pad(a, ((0, rows - a.shape[0]), (0, cols - a.shape[1])))


def _cparams():
    return pltpu.CompilerParams(dimension_semantics=("parallel",),
                                vmem_limit_bytes=_VMEM_LIMIT)


def _pick_tile_m(matmuls, budget_bytes=_VMEM_BUDGET):
    """matmuls: list of (K, Cout_pad). Size tile_m so double-buffered bf16 input
    tiles + bf16 weights + f32 output tiles stay under a v7x-safe VMEM budget."""
    fixed = sum(2 * k * cp * 2 for k, cp in matmuls)                # weights, dbuf
    per_row = sum(2 * (k * 2) + 2 * (cp * 4) for k, cp in matmuls)  # acts + outs, dbuf
    tile = (budget_bytes - fixed) // max(per_row, 1)
    tile = max(64, min(1024, (tile // 64) * 64))
    return int(tile)


def residual_block_forward(x_nchw, params, *, stride=1, tile_m=None):
    """Pallas forward of ResidualBlock. x_nchw: (N, Cin, H, W) f32 -> (N, Cout, Ho, Wo)."""
    n, cin, h, w = x_nchw.shape
    cout = params["w1"].shape[0]
    has_proj = (stride != 1) or (cin != cout)
    cp = _round_up(cout, LANE)                      # lane-dense padded channels

    x = jnp.transpose(x_nchw, (0, 2, 3, 1)).astype(jnp.float32)     # NHWC

    # ----- conv1 (3x3, stride) as one big matmul + per-tile BN stats -----
    p1, ho, wo = _extract_patches(x.astype(jnp.bfloat16), 3, stride, 1)
    m = n * ho * wo
    k1 = p1.shape[1]                                # 9 * cin
    k2 = 9 * cout

    if tile_m is None:
        tile_m = _pick_tile_m([(k1, cp), (k2, cp), (cin, cp)])
    tile_m = _round_up(max(8, min(int(tile_m), _round_up(m, 8))), 8)
    mp = _round_up(m, tile_m)                       # zero-padded rows don't bias BN
    t = mp // tile_m
    inv_m = 1.0 / float(m)

    p1 = _pad2(p1, mp, k1)
    w1 = _pad2(_conv_weight_2d(params["w1"]), k1, cp).astype(jnp.bfloat16)
    # conv biases (b1/b2/bs) are intentionally NOT added: training-mode BN's
    # mean subtraction cancels them exactly.

    y1, st1t = pl.pallas_call(
        conv_stats_kernel,
        grid=(t,),
        in_specs=[pl.BlockSpec((tile_m, k1), lambda i: (i, 0)),
                  pl.BlockSpec((k1, cp), lambda i: (0, 0))],
        out_specs=[pl.BlockSpec((tile_m, cp), lambda i: (i, 0)),
                   pl.BlockSpec((1, 2, cp), lambda i: (i, 0, 0))],
        out_shape=[jax.ShapeDtypeStruct((mp, cp), jnp.float32),
                   jax.ShapeDtypeStruct((t, 2, cp), jnp.float32)],
        compiler_params=_cparams(),
    )(p1, w1)
    st1 = jnp.sum(st1t, axis=0)                     # (2, cp) exact cross-tile reduce

    row = lambda v: _pad2(v.reshape(1, -1).astype(jnp.float32), 1, cp)

    # ----- BN1 + ReLU (exact batch stats), h1 written in bf16 -----
    h1 = pl.pallas_call(
        functools.partial(bn_relu_kernel, inv_m=inv_m),
        grid=(t,),
        in_specs=[pl.BlockSpec((tile_m, cp), lambda i: (i, 0)),
                  pl.BlockSpec((2, cp), lambda i: (0, 0)),
                  pl.BlockSpec((1, cp), lambda i: (0, 0)),
                  pl.BlockSpec((1, cp), lambda i: (0, 0))],
        out_specs=pl.BlockSpec((tile_m, cp), lambda i: (i, 0)),
        out_shape=jax.ShapeDtypeStruct((mp, cp), jnp.bfloat16),
        compiler_params=_cparams(),
    )(y1, st1, row(params["g1"]), row(params["be1"]))

    # ----- conv2 (3x3, stride 1) [+ 1x1 projection] + BN + residual + ReLU -----
    h1_img = h1[:m].reshape(n, ho, wo, cp)[:, :, :, :cout]
    p2, _, _ = _extract_patches(h1_img, 3, 1, 1)
    p2 = _pad2(p2, mp, k2)
    w2 = _pad2(_conv_weight_2d(params["w2"]), k2, cp).astype(jnp.bfloat16)

    if has_proj:
        xs = x[:, ::stride, ::stride, :][:, :ho, :wo, :].reshape(m, cin)
        xs = _pad2(xs, mp, cin).astype(jnp.bfloat16)
        ws = _pad2(_conv_weight_2d(params["ws"]), cin, cp).astype(jnp.bfloat16)

        y2, ysc, st2t, stsct = pl.pallas_call(
            conv2_proj_stats_kernel,
            grid=(t,),
            in_specs=[pl.BlockSpec((tile_m, k2), lambda i: (i, 0)),
                      pl.BlockSpec((k2, cp), lambda i: (0, 0)),
                      pl.BlockSpec((tile_m, cin), lambda i: (i, 0)),
                      pl.BlockSpec((cin, cp), lambda i: (0, 0))],
            out_specs=[pl.BlockSpec((tile_m, cp), lambda i: (i, 0)),
                       pl.BlockSpec((tile_m, cp), lambda i: (i, 0)),
                       pl.BlockSpec((1, 2, cp), lambda i: (i, 0, 0)),
                       pl.BlockSpec((1, 2, cp), lambda i: (i, 0, 0))],
            out_shape=[jax.ShapeDtypeStruct((mp, cp), jnp.float32),
                       jax.ShapeDtypeStruct((mp, cp), jnp.float32),
                       jax.ShapeDtypeStruct((t, 2, cp), jnp.float32),
                       jax.ShapeDtypeStruct((t, 2, cp), jnp.float32)],
            compiler_params=_cparams(),
        )(p2, w2, xs, ws)
        st2 = jnp.sum(st2t, axis=0)
        stsc = jnp.sum(stsct, axis=0)

        out = pl.pallas_call(
            functools.partial(proj_residual_bn_relu_kernel, inv_m=inv_m),
            grid=(t,),
            in_specs=[pl.BlockSpec((tile_m, cp), lambda i: (i, 0)),
                      pl.BlockSpec((tile_m, cp), lambda i: (i, 0)),
                      pl.BlockSpec((2, cp), lambda i: (0, 0)),
                      pl.BlockSpec((2, cp), lambda i: (0, 0)),
                      pl.BlockSpec((1, cp), lambda i: (0, 0)),
                      pl.BlockSpec((1, cp), lambda i: (0, 0)),
                      pl.BlockSpec((1, cp), lambda i: (0, 0)),
                      pl.BlockSpec((1, cp), lambda i: (0, 0))],
            out_specs=pl.BlockSpec((tile_m, cp), lambda i: (i, 0)),
            out_shape=jax.ShapeDtypeStruct((mp, cp), jnp.float32),
            compiler_params=_cparams(),
        )(y2, ysc, st2, stsc, row(params["g2"]), row(params["be2"]),
          row(params["gs"]), row(params["bes"]))
    else:
        y2, st2t = pl.pallas_call(
            conv_stats_kernel,
            grid=(t,),
            in_specs=[pl.BlockSpec((tile_m, k2), lambda i: (i, 0)),
                      pl.BlockSpec((k2, cp), lambda i: (0, 0))],
            out_specs=[pl.BlockSpec((tile_m, cp), lambda i: (i, 0)),
                       pl.BlockSpec((1, 2, cp), lambda i: (i, 0, 0))],
            out_shape=[jax.ShapeDtypeStruct((mp, cp), jnp.float32),
                       jax.ShapeDtypeStruct((t, 2, cp), jnp.float32)],
            compiler_params=_cparams(),
        )(p2, w2)
        st2 = jnp.sum(st2t, axis=0)

        xs = _pad2(x.reshape(m, cin), mp, cp)       # identity residual, f32
        out = pl.pallas_call(
            functools.partial(ident_residual_bn_relu_kernel, inv_m=inv_m),
            grid=(t,),
            in_specs=[pl.BlockSpec((tile_m, cp), lambda i: (i, 0)),
                      pl.BlockSpec((tile_m, cp), lambda i: (i, 0)),
                      pl.BlockSpec((2, cp), lambda i: (0, 0)),
                      pl.BlockSpec((1, cp), lambda i: (0, 0)),
                      pl.BlockSpec((1, cp), lambda i: (0, 0))],
            out_specs=pl.BlockSpec((tile_m, cp), lambda i: (i, 0)),
            out_shape=jax.ShapeDtypeStruct((mp, cp), jnp.float32),
            compiler_params=_cparams(),
        )(y2, xs, st2, row(params["g2"]), row(params["be2"]))

    out = out[:m, :cout].reshape(n, ho, wo, cout)
    return jnp.transpose(out, (0, 3, 1, 2))


# --------------------------- params + reference ---------------------------- #

def init_params(key, cin, cout, stride):
    ks = jax.random.split(key, 12)
    p = {
        "w1": 0.1 * jax.random.normal(ks[0], (cout, cin, 3, 3), jnp.float32),
        "b1": 0.1 * jax.random.normal(ks[1], (cout,), jnp.float32),
        "g1": 1.0 + 0.1 * jax.random.normal(ks[2], (cout,), jnp.float32),
        "be1": 0.1 * jax.random.normal(ks[3], (cout,), jnp.float32),
        "w2": 0.1 * jax.random.normal(ks[4], (cout, cout, 3, 3), jnp.float32),
        "b2": 0.1 * jax.random.normal(ks[5], (cout,), jnp.float32),
        "g2": 1.0 + 0.1 * jax.random.normal(ks[6], (cout,), jnp.float32),
        "be2": 0.1 * jax.random.normal(ks[7], (cout,), jnp.float32),
    }
    if stride != 1 or cin != cout:
        p.update({
            "ws": 0.1 * jax.random.normal(ks[8], (cout, cin, 1, 1), jnp.float32),
            "bs": 0.1 * jax.random.normal(ks[9], (cout,), jnp.float32),
            "gs": 1.0 + 0.1 * jax.random.normal(ks[10], (cout,), jnp.float32),
            "bes": 0.1 * jax.random.normal(ks[11], (cout,), jnp.float32),
        })
    return p


def residual_block_ref(x, params, *, stride=1):
    """Pure-JAX reference mirroring the PyTorch forward (training-mode BN)."""
    def conv(xx, w, b, s, pad):
        y = jax.lax.conv_general_dilated(
            xx, w, window_strides=(s, s), padding=((pad, pad), (pad, pad)),
            dimension_numbers=("NCHW", "OIHW", "NCHW"))
        return y + b[None, :, None, None]

    def bn(xx, g, bt):
        mean = jnp.mean(xx, axis=(0, 2, 3), keepdims=True)
        var = jnp.mean(jnp.square(xx - mean), axis=(0, 2, 3), keepdims=True)
        return (xx - mean) * jax.lax.rsqrt(var + EPS) * g[None, :, None, None] + bt[None, :, None, None]

    cin, cout = x.shape[1], params["w1"].shape[0]
    out = jax.nn.relu(bn(conv(x, params["w1"], params["b1"], stride, 1), params["g1"], params["be1"]))
    out = bn(conv(out, params["w2"], params["b2"], 1, 1), params["g2"], params["be2"])
    if stride != 1 or cin != cout:
        sc = bn(conv(x, params["ws"], params["bs"], stride, 0), params["gs"], params["bes"])
    else:
        sc = x
    return jax.nn.relu(out + sc)


if __name__ == "__main__":
    key = jax.random.PRNGKey(0)
    kx, kp, kx2, kp2, kx3, kp3 = jax.random.split(key, 6)
    TOL = dict(rtol=5e-2, atol=5e-2)   # bf16 MXU inputs, f32 accumulation

    # 1) projection shortcut (channel change), stride 1 — tile_m=128 => 4-step grid
    x = jax.random.normal(kx, (2, 4, 16, 16), jnp.float32)
    p = init_params(kp, 4, 8, 1)
    out = jax.block_until_ready(residual_block_forward(x, p, stride=1, tile_m=128))
    assert out.shape == (2, 8, 16, 16)
    np.testing.assert_allclose(np.asarray(out), np.asarray(residual_block_ref(x, p, stride=1)), **TOL)

    # 2) identity shortcut
    x2 = jax.random.normal(kx2, (2, 8, 16, 16), jnp.float32)
    p2 = init_params(kp2, 8, 8, 1)
    out2 = jax.block_until_ready(residual_block_forward(x2, p2, stride=1, tile_m=128))
    assert out2.shape == (2, 8, 16, 16)
    np.testing.assert_allclose(np.asarray(out2), np.asarray(residual_block_ref(x2, p2, stride=1)), **TOL)

    # 3) projection shortcut with stride 2 (downsampling)
    x3 = jax.random.normal(kx3, (2, 4, 16, 16), jnp.float32)
    p3 = init_params(kp3, 4, 8, 2)
    out3 = jax.block_until_ready(residual_block_forward(x3, p3, stride=2, tile_m=128))
    assert out3.shape == (2, 8, 8, 8)
    np.testing.assert_allclose(np.asarray(out3), np.asarray(residual_block_ref(x3, p3, stride=2)), **TOL)

    print("KERNEL_OK")
</pallas_src>

<mosaic_0001>
module attributes {stable_mosaic.version = 11 : i64} {
  func.func @conv_stats_kernel(%arg0: i32, %arg1: memref<128x36xbf16, #tpu.memory_space<vmem>>, %arg2: memref<36x128xbf16, #tpu.memory_space<vmem>>, %arg3: memref<128x128xf32, #tpu.memory_space<vmem>>, %arg4: memref<1x2x128xf32, #tpu.memory_space<vmem>>) attributes {dimension_semantics = [#tpu.dimension_semantics<parallel>], iteration_bounds = array<i64: 4>, scalar_prefetch = 0 : i64, scratch_operands = 0 : i64, tpu.core_type = #tpu.core_type<tc>, window_params = [{transform_indices = @transform_0, window_bounds = array<i64: 128, 36>}, {pipeline_mode = #tpu.pipeline_mode<synchronous>, transform_indices = @transform_1, window_bounds = array<i64: 36, 128>}, {transform_indices = @transform_2, window_bounds = array<i64: 128, 128>}, {transform_indices = @transform_3, window_bounds = array<i64: 1, 2, 128>}]} {
    %c0 = arith.constant 0 : index
    %c0_0 = arith.constant 0 : index
    %0 = vector.load %arg1[%c0, %c0_0] : memref<128x36xbf16, #tpu.memory_space<vmem>>, vector<128x36xbf16>
    %c0_1 = arith.constant 0 : index
    %c0_2 = arith.constant 0 : index
    %1 = vector.load %arg2[%c0_1, %c0_2] : memref<36x128xbf16, #tpu.memory_space<vmem>>, vector<36x128xbf16>
    %cst = arith.constant dense<0.000000e+00> : vector<128x128xf32>
    %2 = tpu.matmul %0, %1, %cst {dimension_numbers = #tpu.dot_dimension_numbers<[1], [0], [0], [1], [0, 0, 1, 1], [], []>} : vector<128x36xbf16>, vector<36x128xbf16>, vector<128x128xf32> -> vector<128x128xf32>
    %c0_3 = arith.constant 0 : index
    %c0_4 = arith.constant 0 : index
    %3 = vector.load %arg3[%c0_3, %c0_4] : memref<128x128xf32, #tpu.memory_space<vmem>>, vector<128x128xf32>
    tpu.vector_store %arg3[%c0_3, %c0_4], %2 {strides = array<i32>} : memref<128x128xf32, #tpu.memory_space<vmem>>, vector<128x128xf32>,
    %cst_5 = arith.constant dense<0.000000e+00> : vector<128xf32>
    %4 = vector.multi_reduction <add>, %2, %cst_5 [0] : vector<128x128xf32> to vector<128xf32>
    %5 = vector.shape_cast %4 : vector<128xf32> to vector<1x128xf32>
    %6 = arith.mulf %2, %2 : vector<128x128xf32>
    %cst_6 = arith.constant dense<0.000000e+00> : vector<128xf32>
    %7 = vector.multi_reduction <add>, %6, %cst_6 [0] : vector<128x128xf32> to vector<128xf32>
    %8 = vector.shape_cast %7 : vector<128xf32> to vector<1x128xf32>
    %9 = tpu.concatenate %5, %8 in 0 : vector<1x128xf32>, vector<1x128xf32> -> vector<2x128xf32>
    %10 = vector.shape_cast %9 : vector<2x128xf32> to vector<1x2x128xf32>
    %c0_7 = arith.constant 0 : index
    %c0_8 = arith.constant 0 : index
    %c0_9 = arith.constant 0 : index
    %11 = vector.load %arg4[%c0_7, %c0_8, %c0_9] : memref<1x2x128xf32, #tpu.memory_space<vmem>>, vector<1x2x128xf32>
    tpu.vector_store %arg4[%c0_7, %c0_8, %c0_9], %10 {strides = array<i32>} : memref<1x2x128xf32, #tpu.memory_space<vmem>>, vector<1x2x128xf32>,
    return
  }
  func.func @transform_0(%arg0: i32) -> (i32, i32) {
    %c0_i32 = arith.constant 0 : i32
    %c0_i32_0 = arith.constant 0 : i32
    return %arg0, %c0_i32 : i32, i32
  }
  func.func @transform_1(%arg0: i32) -> (i32, i32) {
    %c0_i32 = arith.constant 0 : i32
    %c0_i32_0 = arith.constant 0 : i32
    %c0_i32_1 = arith.constant 0 : i32
    return %c0_i32, %c0_i32_0 : i32, i32
  }
  func.func @transform_2(%arg0: i32) -> (i32, i32) {
    %c0_i32 = arith.constant 0 : i32
    %c0_i32_0 = arith.constant 0 : i32
    return %arg0, %c0_i32 : i32, i32
  }
  func.func @transform_3(%arg0: i32) -> (i32, i32, i32) {
    %c0_i32 = arith.constant 0 : i32
    %c0_i32_0 = arith.constant 0 : i32
    %c0_i32_1 = arith.constant 0 : i32
    return %arg0, %c0_i32, %c0_i32_0 : i32, i32, i32
  }
}

</mosaic_0001>

<llo_original>
// kernel: tpu_custom_call.1
$region0: #{tpu_custom_call.1}
  #allocation0 [shape = 'u32[]', space=smem, size = 0x4, offset = 0x4, fixed_abs, tag = 'smem constant byte address 0x4 - core index']
  #allocation1 [shape = 'u32[72,128]{1,0:T(1,128)}', space=vmem, size = 0x9000, scoped, tag = 'internal scratch']
  %s0 = inlined_call_operand.vmem [shape: bf16[512,36], index: 0, kind: input, shape index: {}]
  %s1 = inlined_call_operand.vmem [shape: bf16[36,128], index: 1, kind: input, shape index: {}]
  %s2 = inlined_call_operand.hbm [shape: f32[512,128], index: 2, kind: output, shape index: {0}]
  %s3 = inlined_call_operand.hbm [shape: f32[4,2,128], index: 3, kind: output, shape index: {1}]
  %4 = xla_tuple %s2, %s3
  %s5 = sld [smem:[#allocation0]]
  $region49: #{tpu_custom_call.1} parent=0
    _
  %s7 = ssub.s32 1, %s5
  %s8 = scalar_select 0, %s7, %s5
  $region1: #{tpu_custom_call.1} parent=0
    #allocation2 [shape = 'u8[131072]{0}', space=vmem, size = 0x20000, scoped, tag = 'output window, operand 0']
    #allocation3 [shape = 's32[2]{0}', space=sflag, size = 0x8, scoped, tag = 'scoped memory for tpu_custom_call.1']
    #allocation4 [shape = 'u8[2048]{0}', space=vmem, size = 0x800, scoped, tag = 'output window, operand 1']
    #allocation5 [shape = 's32[2]{0}', space=sflag, size = 0x8, scoped, tag = 'scoped memory for tpu_custom_call.1']
    %9 = vsyncpa [#allocation3], 0
    %s10 = scalar_lea.sflag [#allocation3], 1
    %11 = vsyncpa %s10, 0
    %12 = vsyncpa [#allocation5], 0
    %s13 = scalar_lea.sflag [#allocation5], 1
    %14 = vsyncpa %s13, 0
    loop: start=0, step=1, limit=6
    $region2: #{tpu_custom_call.1} parent=1 // loop_pre_header
      _
    $region3: #{tpu_custom_call.1} parent=1 // loop_header
      %s16 = sphi 0, %s20
      %p17 = scmp.ge.s32.totalorder %s16, 6
      %s26 = sphi 0, %s28
      %s29 = sphi 0, %s26
      %s30 = sphi 0, %s29
      %s46 = sphi 0, %s30
      %s50 = sphi 0, %s50
      %s52 = sphi 0, %s50
      %s53 = sphi 0, %s52
      %s67 = sphi 0, %s53
      %s73 = sphi 0, %s75
      %s76 = sphi 0, %s73
      %s77 = sphi 0, %s76
      %s93 = sphi 0, %s77
      %s99 = sphi 0, %s101
      %s102 = sphi 0, %s99
      %s103 = sphi 0, %s102
      %s119 = sphi 0, %s103
    $region4: #{tpu_custom_call.1} parent=1 // loop_header_branch
      %19 = sbr.rel (%p17) target = $region8
    $region5: #{tpu_custom_call.1} parent=1 // loop_body
      %s21 = ssub.s32 %s16, 1
      %s22 = ssub.s32 %s16, 2
      %s23 = sadd.s32 %s16, 1
      %s24 = ssub.s32 %s16, %s23
      %p25 = scmp.eq.s32.totalorder %s24, 0
      %s27 = sadd.s32 %s26, 1
      %s28 = scalar_select %p25, %s26, %s27
      %p31 = pneg %p25
      %p32 = scmp.eq.s32.totalorder %s16, 3
      %p33 = por %p31, %p32
      %p34 = scmp.ne.s32.totalorder %s26, %s29
      %p35 = scmp.eq.s32.totalorder %s16, 0
      %p36 = por %p34, %p35
      %p37 = scmp.ne.s32.totalorder %s26, %s29
      %p38 = scmp.eq.s32.totalorder %s21, 3
      %p39 = por %p37, %p38
      %p40 = scmp.ne.s32.totalorder %s29, %s30
      %p41 = scmp.eq.s32.totalorder %s21, 0
      %p42 = por %p40, %p41
      %p43 = scmp.ne.s32.totalorder %s29, %s30
      %p44 = scmp.eq.s32.totalorder %s22, 3
      %p45 = por %p43, %p44
      %p47 = scmp.ne.s32.totalorder %s30, %s46
      %p48 = scmp.eq.s32.totalorder %s22, 0
      %p49 = por %p47, %p48
      %s51 = sadd.s32 %s50, 1
      %p54 = scmp.eq.s32.totalorder %s16, 3
      %p55 = scmp.ne.s32.totalorder %s50, %s52
      %p56 = scmp.eq.s32.totalorder %s16, 0
      %p57 = por %p55, %p56
      %p58 = scmp.ne.s32.totalorder %s50, %s52
      %p59 = scmp.eq.s32.totalorder %s21, 3
      %p60 = por %p58, %p59
      %p61 = scmp.ne.s32.totalorder %s52, %s53
      %p62 = scmp.eq.s32.totalorder %s21, 0
      %p63 = por %p61, %p62
      %p64 = scmp.ne.s32.totalorder %s52, %s53
      %p65 = scmp.eq.s32.totalorder %s22, 3
      %p66 = por %p64, %p65
      %p68 = scmp.ne.s32.totalorder %s53, %s67
      %p69 = scmp.eq.s32.totalorder %s22, 0
      %p70 = por %p68, %p69
      %s71 = ssub.s32 %s16, %s23
      %p72 = scmp.eq.s32.totalorder %s71, 0
      %s74 = sadd.s32 %s73, 1
      %s75 = scalar_select %p72, %s73, %s74
      %p78 = pneg %p72
      %p79 = scmp.eq.s32.totalorder %s16, 3
      %p80 = por %p78, %p79
      %p81 = scmp.ne.s32.totalorder %s73, %s76
      %p82 = scmp.eq.s32.totalorder %s16, 0
      %p83 = por %p81, %p82
      %p84 = scmp.ne.s32.totalorder %s73, %s76
      %p85 = scmp.eq.s32.totalorder %s21, 3
      %p86 = por %p84, %p85
      %p87 = scmp.ne.s32.totalorder %s76, %s77
      %p88 = scmp.eq.s32.totalorder %s21, 0
      %p89 = por %p87, %p88
      %p90 = scmp.ne.s32.totalorder %s76, %s77
      %p91 = scmp.eq.s32.totalorder %s22, 3
      %p92 = por %p90, %p91
      %p94 = scmp.ne.s32.totalorder %s77, %s93
      %p95 = scmp.eq.s32.totalorder %s22, 0
      %p96 = por %p94, %p95
      %s97 = ssub.s32 %s16, %s23
      %p98 = scmp.eq.s32.totalorder %s97, 0
      %s100 = sadd.s32 %s99, 1
      %s101 = scalar_select %p98, %s99, %s100
      %p104 = pneg %p98
      %p105 = scmp.eq.s32.totalorder %s16, 3
      %p106 = por %p104, %p105
      %p107 = scmp.ne.s32.totalorder %s99, %s102
      %p108 = scmp.eq.s32.totalorder %s16, 0
      %p109 = por %p107, %p108
      %p110 = scmp.ne.s32.totalorder %s99, %s102
      %p111 = scmp.eq.s32.totalorder %s21, 3
      %p112 = por %p110, %p111
      %p113 = scmp.ne.s32.totalorder %s102, %s103
      %p114 = scmp.eq.s32.totalorder %s21, 0
      %p115 = por %p113, %p114
      %p116 = scmp.ne.s32.totalorder %s102, %s103
      %p117 = scmp.eq.s32.totalorder %s22, 3
      %p118 = por %p116, %p117
      %p120 = scmp.ne.s32.totalorder %s103, %s119
      %p121 = scmp.eq.s32.totalorder %s22, 0
      %p122 = por %p120, %p121
      %p123 = scmp.le.s32.totalorder 1, %s16
      %p124 = scmp.lt.s32.totalorder %s16, 5
      %p125 = pnand %p123, %p124
      %p126 = pneg %p125
      // Predicated region
      $region9: #{tpu_custom_call.1} parent=5 // pred_check
        _
      $region10: #{tpu_custom_call.1} parent=5 // pred_check_branch
        %128 = sbr.rel (%p125) target = $region12
      $region11: #{tpu_custom_call.1} parent=5 // pred_region
        %s129 = ssub.s32 %s16, 1
        // Predicated region
        $region13: #{tpu_custom_call.1} parent=11 // pred_check
          %p130 = pneg %p63
        $region14: #{tpu_custom_call.1} parent=11 // pred_check_branch
          %132 = sbr.rel (%p130) target = $region16
        $region15: #{tpu_custom_call.1} parent=11 // pred_region
          _
        $region16: #{tpu_custom_call.1} parent=11 // pred_fallthru
          _
      $region12: #{tpu_custom_call.1} parent=5 // pred_fallthru
        _
      %p133 = scmp.lt.s32.totalorder %s16, 4
      // Predicated region
      $region17: #{tpu_custom_call.1} parent=5 // pred_check
        %p134 = pneg %p133
      $region18: #{tpu_custom_call.1} parent=5 // pred_check_branch
        %136 = sbr.rel (%p134) target = $region20
      $region19: #{tpu_custom_call.1} parent=5 // pred_region
        // Predicated region
        $region21: #{tpu_custom_call.1} parent=19 // pred_check
          %p137 = pneg %p36
        $region22: #{tpu_custom_call.1} parent=19 // pred_check_branch
          %139 = sbr.rel (%p137) target = $region24
        $region23: #{tpu_custom_call.1} parent=19 // pred_region
          %s140 = smul.u32 16, %s16
          %p141 = scmp.lt.s32.totalorder %s140, 63
          %s142 = scalar_select %p141, %s140, 63
          %s143 = smul.addr %s142, 4
          %s144 = scalar_lea.vmem %s0, %s143
          %s145 = smul.u32 16, %s16
        $region24: #{tpu_custom_call.1} parent=19 // pred_fallthru
          _
      $region20: #{tpu_custom_call.1} parent=5 // pred_fallthru
        _
      %p146 = scmp.le.s32.totalorder 1, %s16
      %p147 = scmp.lt.s32.totalorder %s16, 5
      %p148 = pnand %p146, %p147
      %p149 = pneg %p148
      // Predicated region
      $region25: #{tpu_custom_call.1} parent=5 // pred_check
        _
      $region26: #{tpu_custom_call.1} parent=5 // pred_check_branch
        %151 = sbr.rel (%p148) target = $region28
      $region27: #{tpu_custom_call.1} parent=5 // pred_region
        %s152 = ssub.s32 %s16, 1
        %s153 = smul.u32 16, %s21
        %p154 = scmp.lt.s32.totalorder %s153, 63
        %s155 = scalar_select %p154, %s153, 63
        %s156 = smul.addr %s155, 4
        %s157 = scalar_lea.vmem %s0, %s156
        %p158 = pneg %p42
        %p159 = pneg %p39
        %p160 = pneg %p63
        %p161 = pneg %p60
        %p162 = pneg %p89
        %p163 = pneg %p86
        %s164 = sand.u32 %s76, 1
        %s165 = scalar_lea.sflag [#allocation3], %s164
        %s166 = sand.u32 %s76, 1
        %s167 = smul.addr %s166, 128
        %s168 = scalar_lea.vmem [#allocation2], %s167
        %p169 = pneg %p115
        %p170 = pneg %p112
        %s171 = sand.u32 %s102, 1
        %s172 = scalar_lea.sflag [#allocation5], %s171
        %s173 = sand.u32 %s102, 1
        %s174 = smul.addr %s173, 2
        %s175 = scalar_lea.vmem [#allocation4], %s174
        %s176 = smul.u32 16, %s21
        %p177 = scmp.lt.s32.totalorder %s176, 63
        %s178 = scalar_select %p177, %s176, 63
        %s179 = smul.addr %s178, 4
        %s180 = scalar_lea.vmem %s0, %s179
        %s181 = smul.u32 16, %s21
        %s182 = smul.u32 16, %s21
        %v184 = vld [vmem:[%s180] sm:$0xf]
        %v185 = vld [vmem:[%s180 + $0x4] sm:$0xf]
        %v186 = vld [vmem:[%s180 + $0x8] sm:$0xf]
        %v187 = vld [vmem:[%s180 + $0xc] sm:$0xf]
        %v188 = vld [vmem:[%s180 + $0x10] sm:$0xf]
        %v189 = vld [vmem:[%s180 + $0x14] sm:$0xf]
        %v190 = vld [vmem:[%s180 + $0x18] sm:$0xf]
        %v191 = vld [vmem:[%s180 + $0x1c] sm:$0xf]
        %v192 = vld [vmem:[%s180 + $0x20] sm:$0xf]
        %v193 = vld [vmem:[%s180 + $0x24] sm:$0xf]
        %v194 = vld [vmem:[%s180 + $0x28] sm:$0xf]
        %v195 = vld [vmem:[%s180 + $0x2c] sm:$0xf]
        %v196 = vld [vmem:[%s180 + $0x30] sm:$0xf]
        %v197 = vld [vmem:[%s180 + $0x34] sm:$0xf]
        %v198 = vld [vmem:[%s180 + $0x38] sm:$0xf]
        %v199 = vld [vmem:[%s180 + $0x3c] sm:$0xf]
        %v200 = vld [vmem:[%s1] sm:$0xf]
        %v201 = vld [vmem:[%s1 + $0x4] sm:$0xf]
        %v202 = vld [vmem:[%s1 + $0x8] sm:$0xf]
        %v203 = vld [vmem:[%s1 + $0xc] sm:$0xf]
        %v204 = vld [vmem:[%s1 + $0x10] sm:$0x3]
        %v221 = vunpack.c.l.b16 %v184
        %v222 = vunpack.c.l.b16 %v185
        %v223 = vunpack.c.l.b16 %v186
        %v224 = vunpack.c.l.b16 %v187
        %v225 = vunpack.c.l.b16 %v188
        %v226 = vunpack.c.l.b16 %v189
        %v227 = vunpack.c.l.b16 %v190
        %v228 = vunpack.c.l.b16 %v191
        %v229 = vunpack.c.l.b16 %v192
        %v230 = vunpack.c.l.b16 %v193
        %v231 = vunpack.c.l.b16 %v194
        %v232 = vunpack.c.l.b16 %v195
        %v233 = vunpack.c.l.b16 %v196
        %v234 = vunpack.c.l.b16 %v197
        %v235 = vunpack.c.l.b16 %v198
        %v236 = vunpack.c.l.b16 %v199
        %v237 = vpack.c.b16 %v222, %v221
        %v238 = vpack.c.b16 %v224, %v223
        %v239 = vpack.c.b16 %v226, %v225
        %v240 = vpack.c.b16 %v228, %v227
        %v241 = vpack.c.b16 %v230, %v229
        %v242 = vpack.c.b16 %v232, %v231
        %v243 = vpack.c.b16 %v234, %v233
        %v244 = vpack.c.b16 %v236, %v235
        %v250 = vunpack.c.l.b16 %v200
        %v251 = vunpack.c.l.b16 %v201
        %v252 = vunpack.c.l.b16 %v202
        %v253 = vunpack.c.l.b16 %v203
        %v254 = vunpack.c.l.b16 %v204
        %v255 = vpack.c.b16 %v251, %v250
        %v256 = vpack.c.b16 %v253, %v252
        %v257 = vpack.c.b16 %v254, %v254
        %vm260 = vcmask 293888
        %v262 = vsel %vm260, %v237, 0
        %v265 = vsel %vm260, %v238, 0
        %v268 = vsel %vm260, %v239, 0
        %v271 = vsel %vm260, %v240, 0
        %v274 = vsel %vm260, %v241, 0
        %v277 = vsel %vm260, %v242, 0
        %v280 = vsel %vm260, %v243, 0
        %v283 = vsel %vm260, %v244, 0
        %vm285 = vcmask 1041408
        %v287 = vsel %vm285, %v257, 0
        %289 = vmatpush.bf16.msra.mxu0 0
        %290 = vmatpush.bf16.msra.mxu0 0
        %291 = vmatpush.bf16.msra.mxu0 0
        %292 = vmatpush.bf16.msra.mxu0 0
        %293 = vmatpush.bf16.msra.mxu0 0
        %294 = vmatpush.bf16.msra.mxu0 %v287
        %295 = vmatpush.bf16.msra.mxu0 %v256
        %296 = vmatpush.bf16.msra.mxu0 %v255
        %297 = vmatmul.bf16.gmra.mxu0 %v262
        %v298 = vpop.f32.mrf.mxu0
        %v299 = vadd.f32 0.0, %v298
        %v300 = vpop.f32.mrf.mxu0
        %v301 = vadd.f32 0.0, %v300
        %302 = vmatmul.bf16.gmra.mxu0 %v265
        %v303 = vpop.f32.mrf.mxu0
        %v304 = vadd.f32 0.0, %v303
        %v305 = vpop.f32.mrf.mxu0
        %v306 = vadd.f32 0.0, %v305
        %307 = vmatmul.bf16.gmra.mxu0 %v268
        %v308 = vpop.f32.mrf.mxu0
        %v309 = vadd.f32 0.0, %v308
        %v310 = vpop.f32.mrf.mxu0
        %v311 = vadd.f32 0.0, %v310
        %312 = vmatmul.bf16.gmra.mxu0 %v271
        %v313 = vpop.f32.mrf.mxu0
        %v314 = vadd.f32 0.0, %v313
        %v315 = vpop.f32.mrf.mxu0
        %v316 = vadd.f32 0.0, %v315
        %317 = vmatmul.bf16.gmra.mxu0 %v274
        %v318 = vpop.f32.mrf.mxu0
        %v319 = vadd.f32 0.0, %v318
        %v320 = vpop.f32.mrf.mxu0
        %v321 = vadd.f32 0.0, %v320
        %322 = vmatmul.bf16.gmra.mxu0 %v277
        %v323 = vpop.f32.mrf.mxu0
        %v324 = vadd.f32 0.0, %v323
        %v325 = vpop.f32.mrf.mxu0
        %v326 = vadd.f32 0.0, %v325
        %327 = vmatmul.bf16.gmra.mxu0 %v280
        %v328 = vpop.f32.mrf.mxu0
        %v329 = vadd.f32 0.0, %v328
        %v330 = vpop.f32.mrf.mxu0
        %v331 = vadd.f32 0.0, %v330
        %332 = vmatmul.bf16.gmra.mxu0 %v283
        %v333 = vpop.f32.mrf.mxu0
        %v334 = vadd.f32 0.0, %v333
        %v335 = vpop.f32.mrf.mxu0
        %v336 = vadd.f32 0.0, %v335
        %337 = vdwg.mxu0
        %338 = vst [vmem:[%s168] sm:$0xff] %v299
        %339 = vst [vmem:[%s168 + $0x8] sm:$0xff] %v301
        %340 = vst [vmem:[%s168 + $0x10] sm:$0xff] %v304
        %341 = vst [vmem:[%s168 + $0x18] sm:$0xff] %v306
        %342 = vst [vmem:[%s168 + $0x20] sm:$0xff] %v309
        %343 = vst [vmem:[%s168 + $0x28] sm:$0xff] %v311
        %344 = vst [vmem:[%s168 + $0x30] sm:$0xff] %v314
        %345 = vst [vmem:[%s168 + $0x38] sm:$0xff] %v316
        %346 = vst [vmem:[%s168 + $0x40] sm:$0xff] %v319
        %347 = vst [vmem:[%s168 + $0x48] sm:$0xff] %v321
        %348 = vst [vmem:[%s168 + $0x50] sm:$0xff] %v324
        %349 = vst [vmem:[%s168 + $0x58] sm:$0xff] %v326
        %350 = vst [vmem:[%s168 + $0x60] sm:$0xff] %v329
        %351 = vst [vmem:[%s168 + $0x68] sm:$0xff] %v331
        %352 = vst [vmem:[%s168 + $0x70] sm:$0xff] %v334
        %353 = vst [vmem:[%s168 + $0x78] sm:$0xff] %v336
        %v354 = vadd.f32 %v299, %v301
        %v355 = vadd.f32 %v354, %v304
        %v356 = vadd.f32 %v355, %v306
        %v357 = vadd.f32 %v356, %v309
        %v358 = vadd.f32 %v357, %v311
        %v359 = vadd.f32 %v358, %v314
        %v360 = vadd.f32 %v359, %v316
        %v361 = vadd.f32 %v360, %v319
        %v362 = vadd.f32 %v361, %v321
        %v363 = vadd.f32 %v362, %v324
        %v364 = vadd.f32 %v363, %v326
        %v365 = vadd.f32 %v364, %v329
        %v366 = vadd.f32 %v365, %v331
        %v367 = vadd.f32 %v366, %v334
        %v368 = vadd.f32 %v367, %v336
        %v369 = vrot.slane %v368, 4
        %v370 = vadd.f32 %v368, %v369
        %v371 = vrot.slane %v370, 2
        %v372 = vadd.f32 %v370, %v371
        %v373 = vrot.slane %v372, 1
        %v374 = vadd.f32 %v372, %v373
        %v375 = vmul.f32 %v299, %v299
        %v376 = vmul.f32 %v301, %v301
        %v377 = vmul.f32 %v304, %v304
        %v378 = vmul.f32 %v306, %v306
        %v379 = vmul.f32 %v309, %v309
        %v380 = vmul.f32 %v311, %v311
        %v381 = vmul.f32 %v314, %v314
        %v382 = vmul.f32 %v316, %v316
        %v383 = vmul.f32 %v319, %v319
        %v384 = vmul.f32 %v321, %v321
        %v385 = vmul.f32 %v324, %v324
        %v386 = vmul.f32 %v326, %v326
        %v387 = vmul.f32 %v329, %v329
        %v388 = vmul.f32 %v331, %v331
        %v389 = vmul.f32 %v334, %v334
        %v390 = vmul.f32 %v336, %v336
        %v391 = vadd.f32 %v375, %v376
        %v392 = vadd.f32 %v391, %v377
        %v393 = vadd.f32 %v392, %v378
        %v394 = vadd.f32 %v393, %v379
        %v395 = vadd.f32 %v394, %v380
        %v396 = vadd.f32 %v395, %v381
        %v397 = vadd.f32 %v396, %v382
        %v398 = vadd.f32 %v397, %v383
        %v399 = vadd.f32 %v398, %v384
        %v400 = vadd.f32 %v399, %v385
        %v401 = vadd.f32 %v400, %v386
        %v402 = vadd.f32 %v401, %v387
        %v403 = vadd.f32 %v402, %v388
        %v404 = vadd.f32 %v403, %v389
        %v405 = vadd.f32 %v404, %v390
        %v406 = vrot.slane %v405, 4
        %v407 = vadd.f32 %v405, %v406
        %v408 = vrot.slane %v407, 2
        %v409 = vadd.f32 %v407, %v408
        %v410 = vrot.slane %v409, 1
        %v411 = vadd.f32 %v409, %v410
        %vm412 = vcmask 1040384
        %v413 = vsel %vm412, %v374, %v411
        %414 = vst [vmem:[%s175] sm:$0x3] %v413
        %s415 = sand.u32 %s76, 1
        %s416 = scalar_lea.sflag [#allocation3], %s415
        %s417 = sand.u32 %s76, 1
        %s418 = smul.addr %s417, 128
        %s419 = scalar_lea.vmem [#allocation2], %s418
        %s420 = sand.u32 %s102, 1
        %s421 = scalar_lea.sflag [#allocation5], %s420
        %s422 = sand.u32 %s102, 1
        %s423 = smul.addr %s422, 2
        %s424 = scalar_lea.vmem [#allocation4], %s423
        // Predicated region
        $region29: #{tpu_custom_call.1} parent=27 // pred_check
          %p425 = pneg %p86
        $region30: #{tpu_custom_call.1} parent=27 // pred_check_branch
          %427 = sbr.rel (%p425) target = $region32
        $region31: #{tpu_custom_call.1} parent=27 // pred_region
          %s428 = smul.u32 16, %s21
          %430 = vsyncadd %s416, 0
          %s431 = smul.addr %s428, 8
          %s432 = scalar_lea.hbm %s2, %s431
          %s433 = sshll.u32 %s419, 4
          %s434 = int_to_ptr.vmem [resolvable:$true] %s433
          %s435 = sshll.u32 %s432, 4
          %s436 = int_to_ptr.hbm [resolvable:$true] %s435
          %441 = dma.vmem_to_hbm [thread:$0]  %s434, 2048, %s436, %s416, 128, 128, 8
        $region32: #{tpu_custom_call.1} parent=27 // pred_fallthru
          _
        // Predicated region
        $region33: #{tpu_custom_call.1} parent=27 // pred_check
          %p442 = pneg %p112
        $region34: #{tpu_custom_call.1} parent=27 // pred_check_branch
          %444 = sbr.rel (%p442) target = $region36
        $region35: #{tpu_custom_call.1} parent=27 // pred_region
          %446 = vsyncadd %s421, 0
          %s447 = smul.addr %s21, 2
          %s448 = scalar_lea.hbm %s3, %s447
          %s450 = sshll.u32 %s424, 4
          %s451 = int_to_ptr.vmem [resolvable:$true] %s450
          %s452 = sshll.u32 %s448, 4
          %s453 = int_to_ptr.hbm [resolvable:$true] %s452
          %455 = dma.vmem_to_hbm [thread:$0]  %s451, 32, %s453, %s421
        $region36: #{tpu_custom_call.1} parent=27 // pred_fallthru
          _
      $region28: #{tpu_custom_call.1} parent=5 // pred_fallthru
        _
      %p456 = scmp.le.s32.totalorder 2, %s16
      // Predicated region
      $region37: #{tpu_custom_call.1} parent=5 // pred_check
        %p457 = pneg %p456
      $region38: #{tpu_custom_call.1} parent=5 // pred_check_branch
        %459 = sbr.rel (%p457) target = $region40
      $region39: #{tpu_custom_call.1} parent=5 // pred_region
        %s460 = ssub.s32 %s16, 2
        // Predicated region
        $region41: #{tpu_custom_call.1} parent=39 // pred_check
          %p461 = pneg %p92
        $region42: #{tpu_custom_call.1} parent=39 // pred_check_branch
          %463 = sbr.rel (%p461) target = $region44
        $region43: #{tpu_custom_call.1} parent=39 // pred_region
          %s464 = sand.u32 %s77, 1
          %s465 = scalar_lea.sflag [#allocation3], %s464
          %s466 = sand.u32 %s77, 1
          %s467 = smul.addr %s466, 128
          %s468 = scalar_lea.vmem [#allocation2], %s467
          %470 = dma.done %s465, 2048
        $region44: #{tpu_custom_call.1} parent=39 // pred_fallthru
          _
        // Predicated region
        $region45: #{tpu_custom_call.1} parent=39 // pred_check
          %p471 = pneg %p118
        $region46: #{tpu_custom_call.1} parent=39 // pred_check_branch
          %473 = sbr.rel (%p471) target = $region48
        $region47: #{tpu_custom_call.1} parent=39 // pred_region
          %s474 = sand.u32 %s103, 1
          %s475 = scalar_lea.sflag [#allocation5], %s474
          %s476 = sand.u32 %s103, 1
          %s477 = smul.addr %s476, 2
          %s478 = scalar_lea.vmem [#allocation4], %s477
          %480 = dma.done %s475, 32
        $region48: #{tpu_custom_call.1} parent=39 // pred_fallthru
          _
      $region40: #{tpu_custom_call.1} parent=5 // pred_fallthru
        _
    $region6: #{tpu_custom_call.1} parent=1 // loop_footer
      %s20 = sadd.s32 1, %s16
    $region7: #{tpu_custom_call.1} parent=1 // loop_footer_branch
      %15 = sbr.rel target = $region3
    $region8: #{tpu_custom_call.1} parent=1 // loop_exit
      _
    %481 = vsyncpa [#allocation3], 1
    %s482 = scalar_lea.sflag [#allocation3], 1
    %483 = vsyncpa %s482, 1
    %484 = vsyncpa [#allocation5], 1
    %s485 = scalar_lea.sflag [#allocation5], 1
    %486 = vsyncpa %s485, 1

</llo_original>
